<compile_context>
chip_gen: v6e
topology: v6e:2x2x1
jax: 0.10.0
libtpu: 0.0.40
codegen_flags: <defaults>
</compile_context>

<pallas_src>
import jax
import jax.numpy as jnp
from jax.experimental import pallas as pl
from jax.experimental.pallas import tpu as pltpu


def _ce_partial_kernel(logits_ref, targets_ref, weights_ref, out_ref):
    """Per-N-tile partial sums for weighted, label-smoothed cross entropy.

    Writes a (1, 8, 128) f32 block where lane 0 = sum_n w[t_n] * (-log p_{n,t_n}),
    lane 1 = sum_n sum_c w_c * (-log p_{n,c}), lane 2 = sum_n w[t_n]; padded rows
    (target == -1) contribute zero to all three.
    """
    x = logits_ref[...].astype(jnp.float32)            # (TN, C), cast in-kernel
    tn, c = x.shape
    tgt = targets_ref[...]                              # (TN, 1) int32, -1 = pad
    w = weights_ref[...].astype(jnp.float32)            # (1, C)

    # numerically stable log-softmax along the class (lane) axis
    m = jnp.max(x, axis=-1, keepdims=True)
    shifted = x - m
    lse = jnp.log(jnp.sum(jnp.exp(shifted), axis=-1, keepdims=True))
    logp = shifted - lse                                 # (TN, C)

    wlogp = w * logp                                     # (TN, C)

    class_ids = jax.lax.broadcasted_iota(jnp.int32, (tn, c), 1)
    hit = class_ids == tgt                               # (TN, C); all-False for pad rows

    # per-row weighted NLL at the target class and the target-class weight,
    # without materializing a one-hot f32 temporary
    nll_rows = -jnp.sum(jnp.where(hit, wlogp, 0.0), axis=-1, keepdims=True)   # (TN, 1)
    w_rows = jnp.sum(jnp.where(hit, w, 0.0), axis=-1, keepdims=True)          # (TN, 1)

    valid = (tgt >= 0).astype(jnp.float32)               # (TN, 1) row mask
    smooth_rows = -jnp.sum(wlogp, axis=-1, keepdims=True) * valid             # (TN, 1)

    nll_sum = jnp.sum(nll_rows)
    smooth_sum = jnp.sum(smooth_rows)
    w_sum = jnp.sum(w_rows)

    lane = jax.lax.broadcasted_iota(jnp.int32, out_ref.shape, 2)  # (1, 8, 128)
    out_ref[...] = jnp.where(
        lane == 0, nll_sum,
        jnp.where(lane == 1, smooth_sum,
                  jnp.where(lane == 2, w_sum, 0.0)))


def classification_loss(logits, targets, weights=None, label_smoothing=0.0,
                        tile_n=None):
    """Pallas equivalent of ClassificationLoss.forward(outputs, targets).

    logits:  (N, C) float (f32 or bf16 -- pass bf16 through, do NOT pre-cast)
    targets: (N,)   int class indices
    weights: (C,)   float per-class weights or None
    """
    n, c = logits.shape
    if weights is None:
        weights = jnp.ones((c,), jnp.float32)
    weights_2d = weights.astype(jnp.float32).reshape(1, c)

    itemsize = jnp.dtype(logits.dtype).itemsize

    # Tile sizing: keep each input buffer ~2 MiB so double-buffered input plus
    # in-kernel f32 temporaries fit comfortably under v7x's 64 MiB VMEM (and the
    # raised scoped limit on v5e/v6e). Tile must be a multiple of 8 sublanes.
    n_ceil8 = ((n + 7) // 8) * 8
    if tile_n is None:
        target_tile_bytes = 2 * 1024 * 1024
        tile_n = max(8, min(1024, (target_tile_bytes // max(1, c * itemsize)) // 8 * 8))
    else:
        tile_n = max(8, (int(tile_n) // 8) * 8)
    tile_n = min(tile_n, n_ceil8)

    num_tiles = -(-n // tile_n)
    n_pad = num_tiles * tile_n

    if n_pad != n:
        logits_p = jnp.pad(logits, ((0, n_pad - n), (0, 0)))
        tgt_p = jnp.pad(targets.astype(jnp.int32).reshape(n, 1),
                        ((0, n_pad - n), (0, 0)), constant_values=-1)
    else:
        logits_p = logits
        tgt_p = targets.astype(jnp.int32).reshape(n, 1)

    cost = pl.CostEstimate(
        flops=5 * n * c,
        transcendentals=n * c + n,                       # one exp/elem + one log/row
        bytes_accessed=n * c * itemsize + n * 4 + c * 4 + num_tiles * 8 * 128 * 4,
    )

    partials = pl.pallas_call(
        _ce_partial_kernel,
        out_shape=jax.ShapeDtypeStruct((num_tiles, 8, 128), jnp.float32),
        grid=(num_tiles,),
        in_specs=[
            pl.BlockSpec((tile_n, c), lambda i: (i, 0)),
            pl.BlockSpec((tile_n, 1), lambda i: (i, 0)),
            pl.BlockSpec((1, c), lambda i: (0, 0)),
        ],
        out_specs=pl.BlockSpec((1, 8, 128), lambda i: (i, 0, 0)),
        compiler_params=pltpu.CompilerParams(
            dimension_semantics=("parallel",),
            vmem_limit_bytes=32 * 1024 * 1024,
        ),
        cost_estimate=cost,
    )(logits_p, tgt_p, weights_2d)

    # tiny wrapper-side reduce over num_tiles partials, then the final divide
    nll_sum = jnp.sum(partials[:, 0, 0])
    smooth_sum = jnp.sum(partials[:, 0, 1])
    w_sum = jnp.sum(partials[:, 0, 2])

    eps = jnp.float32(label_smoothing)
    inv_w = 1.0 / w_sum
    return (1.0 - eps) * nll_sum * inv_w + (eps / jnp.float32(c)) * smooth_sum * inv_w


def _reference_loss(logits, targets, weights, label_smoothing):
    """Pure-JAX reference mirroring torch CrossEntropyLoss semantics."""
    n, c = logits.shape
    logp = jax.nn.log_softmax(logits.astype(jnp.float32), axis=-1)
    one_hot = jax.nn.one_hot(targets, c, dtype=jnp.float32)
    w = weights.astype(jnp.float32)
    wlogp = logp * w[None, :]
    nll = -jnp.sum(one_hot * wlogp, axis=-1)
    tgt_w = w[targets]
    smooth = -jnp.sum(wlogp, axis=-1)
    denom = jnp.sum(tgt_w)
    nll_mean = jnp.sum(nll) / denom
    smooth_mean = jnp.sum(smooth) / denom
    eps = label_smoothing
    return (1.0 - eps) * nll_mean + (eps / c) * smooth_mean


if __name__ == "__main__":
    key = jax.random.PRNGKey(0)
    k_logits, k_targets = jax.random.split(key)

    N, C = 13, 32                     # batch not a multiple of the tile -> exercises masking
    label_smoothing = 0.1

    logits = jax.random.normal(k_logits, (N, C), dtype=jnp.float32)
    targets = jax.random.randint(k_targets, (N,), 0, C, dtype=jnp.int32)
    # deterministic per-class weights (shape (C,) per CrossEntropyLoss(weight=...))
    class_weights = 0.5 + jnp.arange(C, dtype=jnp.float32) / C

    # forced small tile -> multi-tile "parallel" grid with a masked tail tile
    loss = classification_loss(logits, targets, class_weights, label_smoothing, tile_n=8)
    loss = jax.block_until_ready(loss)
    ref = _reference_loss(logits, targets, class_weights, label_smoothing)
    assert jnp.allclose(loss, ref, rtol=1e-5, atol=1e-5), (loss, ref)

    # default path: auto tile size, no smoothing, no weights
    loss0 = jax.block_until_ready(classification_loss(logits, targets))
    ref0 = _reference_loss(logits, targets, jnp.ones((C,), jnp.float32), 0.0)
    assert jnp.allclose(loss0, ref0, rtol=1e-5, atol=1e-5), (loss0, ref0)

    # bf16 logits pass straight through the kernel (halves HBM bytes; cast in-kernel)
    logits_bf16 = logits.astype(jnp.bfloat16)
    loss_bf = jax.block_until_ready(
        classification_loss(logits_bf16, targets, class_weights, label_smoothing))
    ref_bf = _reference_loss(logits_bf16.astype(jnp.float32), targets,
                             class_weights, label_smoothing)
    assert jnp.allclose(loss_bf, ref_bf, rtol=1e-4, atol=1e-4), (loss_bf, ref_bf)

    print("KERNEL_OK")
</pallas_src>

<mosaic_0001>
module attributes {stable_mosaic.version = 11 : i64} {
  func.func @_ce_partial_kernel(%arg0: i32, %arg1: memref<8x32xf32, #tpu.memory_space<vmem>>, %arg2: memref<8x1xi32, #tpu.memory_space<vmem>>, %arg3: memref<1x32xf32, #tpu.memory_space<vmem>>, %arg4: memref<1x8x128xf32, #tpu.memory_space<vmem>>) attributes {dimension_semantics = [#tpu.dimension_semantics<parallel>], iteration_bounds = array<i64: 2>, scalar_prefetch = 0 : i64, scratch_operands = 0 : i64, tpu.core_type = #tpu.core_type<tc>, window_params = [{transform_indices = @transform_0, window_bounds = array<i64: 8, 32>}, {transform_indices = @transform_1, window_bounds = array<i64: 8, 1>}, {pipeline_mode = #tpu.pipeline_mode<synchronous>, transform_indices = @transform_2, window_bounds = array<i64: 1, 32>}, {transform_indices = @transform_3, window_bounds = array<i64: 1, 8, 128>}]} {
    %c0 = arith.constant 0 : index
    %c0_0 = arith.constant 0 : index
    %0 = vector.load %arg1[%c0, %c0_0] : memref<8x32xf32, #tpu.memory_space<vmem>>, vector<8x32xf32>
    %c0_1 = arith.constant 0 : index
    %c0_2 = arith.constant 0 : index
    %1 = vector.load %arg2[%c0_1, %c0_2] : memref<8x1xi32, #tpu.memory_space<vmem>>, vector<8x1xi32>
    %c0_3 = arith.constant 0 : index
    %c0_4 = arith.constant 0 : index
    %2 = vector.load %arg3[%c0_3, %c0_4] : memref<1x32xf32, #tpu.memory_space<vmem>>, vector<1x32xf32>
    %cst = arith.constant dense<0xFF800000> : vector<8xf32>
    %3 = vector.multi_reduction <maximumf>, %0, %cst [1] : vector<8x32xf32> to vector<8xf32>
    %4 = vector.shape_cast %3 : vector<8xf32> to vector<8x1xf32>
    %5 = vector.broadcast %4 : vector<8x1xf32> to vector<8x32xf32>
    %6 = arith.subf %0, %5 : vector<8x32xf32>
    %7 = math.exp %6 : vector<8x32xf32>
    %cst_5 = arith.constant dense<0.000000e+00> : vector<8xf32>
    %8 = vector.multi_reduction <add>, %7, %cst_5 [1] : vector<8x32xf32> to vector<8xf32>
    %9 = vector.shape_cast %8 : vector<8xf32> to vector<8x1xf32>
    %10 = math.log %9 : vector<8x1xf32>
    %11 = vector.broadcast %10 : vector<8x1xf32> to vector<8x32xf32>
    %12 = arith.subf %6, %11 : vector<8x32xf32>
    %13 = vector.broadcast %2 : vector<1x32xf32> to vector<8x32xf32>
    %14 = arith.mulf %13, %12 : vector<8x32xf32>
    %15 = tpu.iota {dimensions = array<i32: 1>} : vector<8x32xi32>
    %16 = vector.broadcast %1 : vector<8x1xi32> to vector<8x32xi32>
    %17 = arith.cmpi eq, %15, %16 : vector<8x32xi32>
    %cst_6 = arith.constant 0.000000e+00 : f32
    %18 = vector.broadcast %cst_6 : f32 to vector<8x32xf32>
    %19 = arith.select %17, %14, %18 : vector<8x32xi1>, vector<8x32xf32>
    %cst_7 = arith.constant dense<0.000000e+00> : vector<8xf32>
    %20 = vector.multi_reduction <add>, %19, %cst_7 [1] : vector<8x32xf32> to vector<8xf32>
    %21 = vector.shape_cast %20 : vector<8xf32> to vector<8x1xf32>
    %cst_8 = arith.constant 0.000000e+00 : f32
    %22 = vector.broadcast %cst_8 : f32 to vector<8x1xf32>
    %23 = arith.subf %22, %21 : vector<8x1xf32>
    %cst_9 = arith.constant 0.000000e+00 : f32
    %24 = vector.shape_cast %2 : vector<1x32xf32> to vector<1x32xf32>
    %25 = vector.broadcast %24 : vector<1x32xf32> to vector<8x32xf32>
    %26 = vector.broadcast %cst_9 : f32 to vector<8x32xf32>
    %27 = arith.select %17, %25, %26 : vector<8x32xi1>, vector<8x32xf32>
    %cst_10 = arith.constant dense<0.000000e+00> : vector<8xf32>
    %28 = vector.multi_reduction <add>, %27, %cst_10 [1] : vector<8x32xf32> to vector<8xf32>
    %29 = vector.shape_cast %28 : vector<8xf32> to vector<8x1xf32>
    %c0_i32 = arith.constant 0 : i32
    %30 = vector.broadcast %c0_i32 : i32 to vector<8x1xi32>
    %31 = arith.cmpi sge, %1, %30 : vector<8x1xi32>
    %32 = arith.extui %31 : vector<8x1xi1> to vector<8x1xi32>
    %33 = arith.sitofp %32 : vector<8x1xi32> to vector<8x1xf32>
    %cst_11 = arith.constant dense<0.000000e+00> : vector<8xf32>
    %34 = vector.multi_reduction <add>, %14, %cst_11 [1] : vector<8x32xf32> to vector<8xf32>
    %35 = vector.shape_cast %34 : vector<8xf32> to vector<8x1xf32>
    %cst_12 = arith.constant 0.000000e+00 : f32
    %36 = vector.broadcast %cst_12 : f32 to vector<8x1xf32>
    %37 = arith.subf %36, %35 : vector<8x1xf32>
    %38 = arith.mulf %37, %33 : vector<8x1xf32>
    %39 = vector.shape_cast %23 : vector<8x1xf32> to vector<1x8x1xf32>
    %cst_13 = arith.constant dense<0.000000e+00> : vector<1xf32>
    %40 = vector.multi_reduction <add>, %39, %cst_13 [1, 2] : vector<1x8x1xf32> to vector<1xf32>
    %41 = vector.shape_cast %40 : vector<1xf32> to vector<1x1x1xf32>
    %42 = vector.extract %41[0, 0, 0] : f32 from vector<1x1x1xf32>
    %43 = vector.shape_cast %38 : vector<8x1xf32> to vector<1x8x1xf32>
    %cst_14 = arith.constant dense<0.000000e+00> : vector<1xf32>
    %44 = vector.multi_reduction <add>, %43, %cst_14 [1, 2] : vector<1x8x1xf32> to vector<1xf32>
    %45 = vector.shape_cast %44 : vector<1xf32> to vector<1x1x1xf32>
    %46 = vector.extract %45[0, 0, 0] : f32 from vector<1x1x1xf32>
    %47 = vector.shape_cast %29 : vector<8x1xf32> to vector<1x8x1xf32>
    %cst_15 = arith.constant dense<0.000000e+00> : vector<1xf32>
    %48 = vector.multi_reduction <add>, %47, %cst_15 [1, 2] : vector<1x8x1xf32> to vector<1xf32>
    %49 = vector.shape_cast %48 : vector<1xf32> to vector<1x1x1xf32>
    %50 = vector.extract %49[0, 0, 0] : f32 from vector<1x1x1xf32>
    %51 = tpu.iota {dimensions = array<i32: 2>} : vector<1x8x128xi32>
    %c0_i32_16 = arith.constant 0 : i32
    %52 = vector.broadcast %c0_i32_16 : i32 to vector<1x8x128xi32>
    %53 = arith.cmpi eq, %51, %52 : vector<1x8x128xi32>
    %c1_i32 = arith.constant 1 : i32
    %54 = vector.broadcast %c1_i32 : i32 to vector<1x8x128xi32>
    %55 = arith.cmpi eq, %51, %54 : vector<1x8x128xi32>
    %c2_i32 = arith.constant 2 : i32
    %56 = vector.broadcast %c2_i32 : i32 to vector<1x8x128xi32>
    %57 = arith.cmpi eq, %51, %56 : vector<1x8x128xi32>
    %cst_17 = arith.constant 0.000000e+00 : f32
    %58 = vector.broadcast %50 : f32 to vector<1x8x128xf32>
    %59 = vector.broadcast %cst_17 : f32 to vector<1x8x128xf32>
    %60 = arith.select %57, %58, %59 : vector<1x8x128xi1>, vector<1x8x128xf32>
    %61 = vector.broadcast %46 : f32 to vector<1x8x128xf32>
    %62 = arith.select %55, %61, %60 : vector<1x8x128xi1>, vector<1x8x128xf32>
    %63 = vector.broadcast %42 : f32 to vector<1x8x128xf32>
    %64 = arith.select %53, %63, %62 : vector<1x8x128xi1>, vector<1x8x128xf32>
    %c0_18 = arith.constant 0 : index
    %c0_19 = arith.constant 0 : index
    %c0_20 = arith.constant 0 : index
    %65 = vector.load %arg4[%c0_18, %c0_19, %c0_20] : memref<1x8x128xf32, #tpu.memory_space<vmem>>, vector<1x8x128xf32>
    tpu.vector_store %arg4[%c0_18, %c0_19, %c0_20], %64 {strides = array<i32>} : memref<1x8x128xf32, #tpu.memory_space<vmem>>, vector<1x8x128xf32>,
    return
  }
  func.func @transform_0(%arg0: i32) -> (i32, i32) {
    %c0_i32 = arith.constant 0 : i32
    %c0_i32_0 = arith.constant 0 : i32
    return %arg0, %c0_i32 : i32, i32
  }
  func.func @transform_1(%arg0: i32) -> (i32, i32) {
    %c0_i32 = arith.constant 0 : i32
    %c0_i32_0 = arith.constant 0 : i32
    return %arg0, %c0_i32 : i32, i32
  }
  func.func @transform_2(%arg0: i32) -> (i32, i32) {
    %c0_i32 = arith.constant 0 : i32
    %c0_i32_0 = arith.constant 0 : i32
    %c0_i32_1 = arith.constant 0 : i32
    return %c0_i32, %c0_i32_0 : i32, i32
  }
  func.func @transform_3(%arg0: i32) -> (i32, i32, i32) {
    %c0_i32 = arith.constant 0 : i32
    %c0_i32_0 = arith.constant 0 : i32
    %c0_i32_1 = arith.constant 0 : i32
    return %arg0, %c0_i32, %c0_i32_0 : i32, i32, i32
  }
}

</mosaic_0001>

<llo_original>
// kernel: tpu_custom_call.1
$region0: #{tpu_custom_call.1}
  #allocation0 [shape = 'u32[]', space=smem, size = 0x4, offset = 0x4, fixed_abs, tag = 'smem constant byte address 0x4 - core index']
  #allocation1 [shape = 'u32[144,128]{1,0:T(1,128)}', space=vmem, size = 0x12000, scoped, tag = 'internal scratch']
  %s0 = inlined_call_operand.vmem [shape: f32[16,32], index: 0, kind: input, shape index: {}]
  %s1 = inlined_call_operand.vmem [shape: s32[16,1], index: 1, kind: input, shape index: {}]
  %s2 = inlined_call_operand.vmem [shape: f32[1,32], index: 2, kind: input, shape index: {}]
  %s3 = inlined_call_operand.hbm [shape: f32[2,8,128], index: 3, kind: output, shape index: {}]
  %s4 = sld [smem:[#allocation0]]
  $region45: #{tpu_custom_call.1} parent=0
    _
  %s6 = ssub.s32 1, %s4
  %s7 = scalar_select 0, %s6, %s4
  $region1: #{tpu_custom_call.1} parent=0
    #allocation2 [shape = 'u8[8192]{0}', space=vmem, size = 0x2000, scoped, tag = 'output window, operand 0']
    #allocation3 [shape = 's32[2]{0}', space=sflag, size = 0x8, scoped, tag = 'scoped memory for tpu_custom_call.1']
    %8 = vsyncpa [#allocation3], 0
    %s9 = scalar_lea.sflag [#allocation3], 1
    %10 = vsyncpa %s9, 0
    loop: start=0, step=1, limit=4
    $region2: #{tpu_custom_call.1} parent=1 // loop_pre_header
      _
    $region3: #{tpu_custom_call.1} parent=1 // loop_header
      %s12 = sphi 0, %s16
      %p13 = scmp.ge.s32.totalorder %s12, 4
      %s22 = sphi 0, %s24
      %s25 = sphi 0, %s22
      %s26 = sphi 0, %s25
      %s42 = sphi 0, %s26
      %s48 = sphi 0, %s50
      %s51 = sphi 0, %s48
      %s52 = sphi 0, %s51
      %s68 = sphi 0, %s52
      %s72 = sphi 0, %s72
      %s74 = sphi 0, %s72
      %s75 = sphi 0, %s74
      %s89 = sphi 0, %s75
      %s95 = sphi 0, %s97
      %s98 = sphi 0, %s95
      %s99 = sphi 0, %s98
      %s115 = sphi 0, %s99
    $region4: #{tpu_custom_call.1} parent=1 // loop_header_branch
      %15 = sbr.rel (%p13) target = $region8
    $region5: #{tpu_custom_call.1} parent=1 // loop_body
      %s17 = ssub.s32 %s12, 1
      %s18 = ssub.s32 %s12, 2
      %s19 = sadd.s32 %s12, 1
      %s20 = ssub.s32 %s12, %s19
      %p21 = scmp.eq.s32.totalorder %s20, 0
      %s23 = sadd.s32 %s22, 1
      %s24 = scalar_select %p21, %s22, %s23
      %p27 = pneg %p21
      %p28 = scmp.eq.s32.totalorder %s12, 1
      %p29 = por %p27, %p28
      %p30 = scmp.ne.s32.totalorder %s22, %s25
      %p31 = scmp.eq.s32.totalorder %s12, 0
      %p32 = por %p30, %p31
      %p33 = scmp.ne.s32.totalorder %s22, %s25
      %p34 = scmp.eq.s32.totalorder %s17, 1
      %p35 = por %p33, %p34
      %p36 = scmp.ne.s32.totalorder %s25, %s26
      %p37 = scmp.eq.s32.totalorder %s17, 0
      %p38 = por %p36, %p37
      %p39 = scmp.ne.s32.totalorder %s25, %s26
      %p40 = scmp.eq.s32.totalorder %s18, 1
      %p41 = por %p39, %p40
      %p43 = scmp.ne.s32.totalorder %s26, %s42
      %p44 = scmp.eq.s32.totalorder %s18, 0
      %p45 = por %p43, %p44
      %s46 = ssub.s32 %s12, %s19
      %p47 = scmp.eq.s32.totalorder %s46, 0
      %s49 = sadd.s32 %s48, 1
      %s50 = scalar_select %p47, %s48, %s49
      %p53 = pneg %p47
      %p54 = scmp.eq.s32.totalorder %s12, 1
      %p55 = por %p53, %p54
      %p56 = scmp.ne.s32.totalorder %s48, %s51
      %p57 = scmp.eq.s32.totalorder %s12, 0
      %p58 = por %p56, %p57
      %p59 = scmp.ne.s32.totalorder %s48, %s51
      %p60 = scmp.eq.s32.totalorder %s17, 1
      %p61 = por %p59, %p60
      %p62 = scmp.ne.s32.totalorder %s51, %s52
      %p63 = scmp.eq.s32.totalorder %s17, 0
      %p64 = por %p62, %p63
      %p65 = scmp.ne.s32.totalorder %s51, %s52
      %p66 = scmp.eq.s32.totalorder %s18, 1
      %p67 = por %p65, %p66
      %p69 = scmp.ne.s32.totalorder %s52, %s68
      %p70 = scmp.eq.s32.totalorder %s18, 0
      %p71 = por %p69, %p70
      %s73 = sadd.s32 %s72, 1
      %p76 = scmp.eq.s32.totalorder %s12, 1
      %p77 = scmp.ne.s32.totalorder %s72, %s74
      %p78 = scmp.eq.s32.totalorder %s12, 0
      %p79 = por %p77, %p78
      %p80 = scmp.ne.s32.totalorder %s72, %s74
      %p81 = scmp.eq.s32.totalorder %s17, 1
      %p82 = por %p80, %p81
      %p83 = scmp.ne.s32.totalorder %s74, %s75
      %p84 = scmp.eq.s32.totalorder %s17, 0
      %p85 = por %p83, %p84
      %p86 = scmp.ne.s32.totalorder %s74, %s75
      %p87 = scmp.eq.s32.totalorder %s18, 1
      %p88 = por %p86, %p87
      %p90 = scmp.ne.s32.totalorder %s75, %s89
      %p91 = scmp.eq.s32.totalorder %s18, 0
      %p92 = por %p90, %p91
      %s93 = ssub.s32 %s12, %s19
      %p94 = scmp.eq.s32.totalorder %s93, 0
      %s96 = sadd.s32 %s95, 1
      %s97 = scalar_select %p94, %s95, %s96
      %p100 = pneg %p94
      %p101 = scmp.eq.s32.totalorder %s12, 1
      %p102 = por %p100, %p101
      %p103 = scmp.ne.s32.totalorder %s95, %s98
      %p104 = scmp.eq.s32.totalorder %s12, 0
      %p105 = por %p103, %p104
      %p106 = scmp.ne.s32.totalorder %s95, %s98
      %p107 = scmp.eq.s32.totalorder %s17, 1
      %p108 = por %p106, %p107
      %p109 = scmp.ne.s32.totalorder %s98, %s99
      %p110 = scmp.eq.s32.totalorder %s17, 0
      %p111 = por %p109, %p110
      %p112 = scmp.ne.s32.totalorder %s98, %s99
      %p113 = scmp.eq.s32.totalorder %s18, 1
      %p114 = por %p112, %p113
      %p116 = scmp.ne.s32.totalorder %s99, %s115
      %p117 = scmp.eq.s32.totalorder %s18, 0
      %p118 = por %p116, %p117
      %p119 = scmp.le.s32.totalorder 1, %s12
      %p120 = scmp.lt.s32.totalorder %s12, 3
      %p121 = pnand %p119, %p120
      %p122 = pneg %p121
      // Predicated region
      $region9: #{tpu_custom_call.1} parent=5 // pred_check
        _
      $region10: #{tpu_custom_call.1} parent=5 // pred_check_branch
        %124 = sbr.rel (%p121) target = $region12
      $region11: #{tpu_custom_call.1} parent=5 // pred_region
        %s125 = ssub.s32 %s12, 1
        // Predicated region
        $region13: #{tpu_custom_call.1} parent=11 // pred_check
          %p126 = pneg %p85
        $region14: #{tpu_custom_call.1} parent=11 // pred_check_branch
          %128 = sbr.rel (%p126) target = $region16
        $region15: #{tpu_custom_call.1} parent=11 // pred_region
          _
        $region16: #{tpu_custom_call.1} parent=11 // pred_fallthru
          _
      $region12: #{tpu_custom_call.1} parent=5 // pred_fallthru
        _
      %p129 = scmp.lt.s32.totalorder %s12, 2
      // Predicated region
      $region17: #{tpu_custom_call.1} parent=5 // pred_check
        %p130 = pneg %p129
      $region18: #{tpu_custom_call.1} parent=5 // pred_check_branch
        %132 = sbr.rel (%p130) target = $region20
      $region19: #{tpu_custom_call.1} parent=5 // pred_region
        // Predicated region
        $region21: #{tpu_custom_call.1} parent=19 // pred_check
          %p133 = pneg %p32
        $region22: #{tpu_custom_call.1} parent=19 // pred_check_branch
          %135 = sbr.rel (%p133) target = $region24
        $region23: #{tpu_custom_call.1} parent=19 // pred_region
          %p136 = scmp.lt.s32.totalorder %s12, 1
          %s137 = scalar_select %p136, %s12, 1
          %s138 = smul.addr %s137, 8
          %s139 = scalar_lea.vmem %s0, %s138
        $region24: #{tpu_custom_call.1} parent=19 // pred_fallthru
          _
        // Predicated region
        $region25: #{tpu_custom_call.1} parent=19 // pred_check
          %p140 = pneg %p58
        $region26: #{tpu_custom_call.1} parent=19 // pred_check_branch
          %142 = sbr.rel (%p140) target = $region28
        $region27: #{tpu_custom_call.1} parent=19 // pred_region
          %p143 = scmp.lt.s32.totalorder %s12, 1
          %s144 = scalar_select %p143, %s12, 1
          %s145 = smul.addr %s144, 8
          %s146 = scalar_lea.vmem %s1, %s145
        $region28: #{tpu_custom_call.1} parent=19 // pred_fallthru
          _
      $region20: #{tpu_custom_call.1} parent=5 // pred_fallthru
        _
      %p147 = scmp.le.s32.totalorder 1, %s12
      %p148 = scmp.lt.s32.totalorder %s12, 3
      %p149 = pnand %p147, %p148
      %p150 = pneg %p149
      // Predicated region
      $region29: #{tpu_custom_call.1} parent=5 // pred_check
        _
      $region30: #{tpu_custom_call.1} parent=5 // pred_check_branch
        %152 = sbr.rel (%p149) target = $region32
      $region31: #{tpu_custom_call.1} parent=5 // pred_region
        %s153 = ssub.s32 %s12, 1
        %p154 = scmp.lt.s32.totalorder %s17, 1
        %s155 = scalar_select %p154, %s17, 1
        %s156 = smul.addr %s155, 8
        %s157 = scalar_lea.vmem %s0, %s156
        %p158 = pneg %p38
        %p159 = pneg %p35
        %p160 = scmp.lt.s32.totalorder %s17, 1
        %s161 = scalar_select %p160, %s17, 1
        %s162 = smul.addr %s161, 8
        %s163 = scalar_lea.vmem %s1, %s162
        %p164 = pneg %p64
        %p165 = pneg %p61
        %p166 = pneg %p85
        %p167 = pneg %p82
        %p168 = pneg %p111
        %p169 = pneg %p108
        %s170 = sand.u32 %s98, 1
        %s171 = scalar_lea.sflag [#allocation3], %s170
        %s172 = sand.u32 %s98, 1
        %s173 = smul.addr %s172, 8
        %s174 = scalar_lea.vmem [#allocation2], %s173
        %p175 = scmp.lt.s32.totalorder %s17, 1
        %s176 = scalar_select %p175, %s17, 1
        %s177 = smul.addr %s176, 8
        %s178 = scalar_lea.vmem %s0, %s177
        %p179 = scmp.lt.s32.totalorder %s17, 1
        %s180 = scalar_select %p179, %s17, 1
        %s181 = smul.addr %s180, 8
        %s182 = scalar_lea.vmem %s1, %s181
        %v183 = vld [vmem:[%s178] sm:$0xff]
        %v184 = vld [vmem:[%s182] sm:$0xff]
        %v185 = vld [vmem:[%s2] sm:$0x1]
        %vm186 = vcmask 261120
        %v187 = vsel %vm186, %v183, -inf
        %188 = vmax.xlane.f32.xlu0 %v187
        %v189 = vpop.xlane.xlu0 %188
        %v190 = vsub.f32 %v183, %v189
        %v191 = vmul.f32 %v190, 1.442695
        %v192 = vpow.pop %v191
        %v193 = vsel %vm186, %v192, 0.0
        %194 = vadd.xlane.f32.xlu0 %v193
        %v195 = vpop.xlane.xlu0 %194
        %v196 = vlog2.pop %v195
        %v197 = vmul.f32 %v196, 0.6931472
        %v198 = vsub.f32 %v190, %v197
        %v200 = vlaneseq
        %v201 = vshrl.u32 %v200, 7
        %v202 = vsub.s32 0, %v201
        %v203 = vrot.slane %v185, %v202
        %v205 = vmul.f32 %v203, %v198
        %v206 = vlaneseq
        %v207 = vand.u32 %v206, 127
        %208 = vset.pattern.permute.xlu0 0
        %209 = vperm.xlu0 %208, %v184
        %v210 = vpop.permute.xlu0 %209
        %vm211 = vcmp.eq.s32.totalorder %v207, %v210
        %v212 = vsel %vm211, %v205, 0.0
        %v213 = vsel %vm186, %v212, 0.0
        %214 = vadd.xlane.f32.xlu0 %v213
        %v215 = vpop.xlane.xlu0 %214
        %v216 = vsub.f32 0.0, %v215
        %v217 = vsel %vm211, %v203, 0.0
        %v218 = vsel %vm186, %v217, 0.0
        %219 = vadd.xlane.f32.xlu0 %v218
        %v220 = vpop.xlane.xlu0 %219
        %vm221 = vcmp.ge.s32.totalorder %v184, 0
        %v222 = vsel %vm221, 1, 0
        %v223 = vcvt.s32.f32 %v222
        %v224 = vsel %vm186, %v205, 0.0
        %225 = vadd.xlane.f32.xlu0 %v224
        %v226 = vpop.xlane.xlu0 %225
        %v227 = vsub.f32 0.0, %v226
        %v228 = vmul.f32 %v227, %v223
        %vm229 = vcmask 7168
        %v230 = vsel %vm229, %v216, 0.0
        %231 = vadd.xlane.f32.xlu0 %v230
        %v232 = vpop.xlane.xlu0 %231
        %v233 = vrot.slane %v232, 4
        %v234 = vadd.f32 %v232, %v233
        %v235 = vrot.slane %v234, 2
        %v236 = vadd.f32 %v234, %v235
        %v237 = vrot.slane %v236, 1
        %v238 = vadd.f32 %v236, %v237
        %s239 = vtos %v238
        %v240 = vsel %vm229, %v228, 0.0
        %241 = vadd.xlane.f32.xlu0 %v240
        %v242 = vpop.xlane.xlu0 %241
        %v243 = vrot.slane %v242, 4
        %v244 = vadd.f32 %v242, %v243
        %v245 = vrot.slane %v244, 2
        %v246 = vadd.f32 %v244, %v245
        %v247 = vrot.slane %v246, 1
        %v248 = vadd.f32 %v246, %v247
        %s249 = vtos %v248
        %v250 = vsel %vm229, %v220, 0.0
        %251 = vadd.xlane.f32.xlu0 %v250
        %v252 = vpop.xlane.xlu0 %251
        %v253 = vrot.slane %v252, 4
        %v254 = vadd.f32 %v252, %v253
        %v255 = vrot.slane %v254, 2
        %v256 = vadd.f32 %v254, %v255
        %v257 = vrot.slane %v256, 1
        %v258 = vadd.f32 %v256, %v257
        %s259 = vtos %v258
        %vm260 = vcmp.eq.s32.totalorder %v207, 0
        %vm261 = vcmp.eq.s32.totalorder %v207, 1
        %vm262 = vcmp.eq.s32.totalorder %v207, 2
        %v263 = vstv %s259
        %v264 = vsel %vm262, %v263, 0.0
        %v265 = vstv %s249
        %v266 = vsel %vm261, %v265, %v264
        %v267 = vstv %s239
        %v268 = vsel %vm260, %v267, %v266
        %269 = vst [vmem:[%s174] sm:$0xff] %v268
        %s270 = sand.u32 %s98, 1
        %s271 = scalar_lea.sflag [#allocation3], %s270
        %s272 = sand.u32 %s98, 1
        %s273 = smul.addr %s272, 8
        %s274 = scalar_lea.vmem [#allocation2], %s273
        // Predicated region
        $region33: #{tpu_custom_call.1} parent=31 // pred_check
          %p275 = pneg %p108
        $region34: #{tpu_custom_call.1} parent=31 // pred_check_branch
          %277 = sbr.rel (%p275) target = $region36
        $region35: #{tpu_custom_call.1} parent=31 // pred_region
          %s279 = ssub.s32 128, 128
          %280 = vsyncadd %s271, %s279
          %s281 = smul.addr %s17, 128
          %s282 = scalar_lea.hbm %s3, %s281
          %s284 = sshll.u32 %s274, 4
          %s285 = int_to_ptr.vmem [resolvable:$true] %s284
          %287 = dma.vmem_to_hbm [thread:$0]  %s285, 128, %s282, %s271
        $region36: #{tpu_custom_call.1} parent=31 // pred_fallthru
          _
      $region32: #{tpu_custom_call.1} parent=5 // pred_fallthru
        _
      %p288 = scmp.le.s32.totalorder 2, %s12
      // Predicated region
      $region37: #{tpu_custom_call.1} parent=5 // pred_check
        %p289 = pneg %p288
      $region38: #{tpu_custom_call.1} parent=5 // pred_check_branch
        %291 = sbr.rel (%p289) target = $region40
      $region39: #{tpu_custom_call.1} parent=5 // pred_region
        %s292 = ssub.s32 %s12, 2
        // Predicated region
        $region41: #{tpu_custom_call.1} parent=39 // pred_check
          %p293 = pneg %p114
        $region42: #{tpu_custom_call.1} parent=39 // pred_check_branch
          %295 = sbr.rel (%p293) target = $region44
        $region43: #{tpu_custom_call.1} parent=39 // pred_region
          %s296 = sand.u32 %s99, 1
          %s297 = scalar_lea.sflag [#allocation3], %s296
          %s298 = sand.u32 %s99, 1
          %s299 = smul.addr %s298, 8
          %s300 = scalar_lea.vmem [#allocation2], %s299
          %301 = dma.done %s297, 128
        $region44: #{tpu_custom_call.1} parent=39 // pred_fallthru
          _
      $region40: #{tpu_custom_call.1} parent=5 // pred_fallthru
        _
    $region6: #{tpu_custom_call.1} parent=1 // loop_footer
      %s16 = sadd.s32 1, %s12
    $region7: #{tpu_custom_call.1} parent=1 // loop_footer_branch
      %11 = sbr.rel target = $region3
    $region8: #{tpu_custom_call.1} parent=1 // loop_exit
      _
    %302 = vsyncpa [#allocation3], 1
    %s303 = scalar_lea.sflag [#allocation3], 1
    %304 = vsyncpa %s303, 1

</llo_original>
